<compile_context>
chip_gen: v5e
topology: v5e:2x2
jax: 0.10.0
libtpu: 0.0.40
codegen_flags: <defaults>
</compile_context>

<pallas_src>
import jax
import jax.numpy as jnp
from jax.experimental import pallas as pl
from jax.experimental.pallas import tpu as pltpu

B, D_IN, D_OUT, INTRINSIC = 8, 32, 16, 24
K_AUG = 40                       # D_IN + 1 (bias row), padded to a sublane multiple of 8


# ---------------- fused Pallas kernel ----------------

def _sparse_wrap_kernel(v_ref, x_ref, w0t_ref, pwt_ref, y_ref):
    # Projected augmented weights, built directly in W^T orientation:
    #   W^T_aug = W0^T_aug + sum_k v[k] * P_aug[k]
    # (row D_IN of the augmented matrices carries the bias / bias projection).
    # Two interleaved partial sums (even/odd k) halve the serial add chain.
    wt_even = w0t_ref[...]                          # (K_AUG, D_OUT)
    wt_odd = jnp.zeros_like(wt_even)
    for k in range(0, INTRINSIC, 2):                # static unroll, d = 24 (even)
        wt_even = wt_even + v_ref[k] * pwt_ref[k]
        wt_odd = wt_odd + v_ref[k + 1] * pwt_ref[k + 1]
    wt = wt_even + wt_odd                           # (K_AUG, D_OUT)
    # Single real MXU matmul; the ones column of x_aug applies the bias.
    y_ref[...] = jnp.dot(x_ref[...], wt, preferred_element_type=jnp.float32)


# ---------------- wrapper ----------------

@jax.jit
def sparse_wrap_forward(x, v_flat, w0t_aug, pwt_aug):
    """x: (B, D_IN); v_flat: (d,); w0t_aug: (K_AUG, D_OUT); pwt_aug: (d, K_AUG, D_OUT)."""
    b = x.shape[0]
    # Augment activations with the bias ones-column (+ zero pad to K_AUG).
    x_aug = jnp.concatenate(
        [x, jnp.ones((b, 1), x.dtype), jnp.zeros((b, K_AUG - D_IN - 1), x.dtype)], axis=1)
    return pl.pallas_call(
        _sparse_wrap_kernel,
        out_shape=jax.ShapeDtypeStruct((b, D_OUT), jnp.float32),
        in_specs=[
            pl.BlockSpec(memory_space=pltpu.MemorySpace.SMEM),   # v       (d,)
            pl.BlockSpec(memory_space=pltpu.MemorySpace.VMEM),   # x_aug   (B, K_AUG)
            pl.BlockSpec(memory_space=pltpu.MemorySpace.VMEM),   # W0^T_aug(K_AUG, D_OUT)
            pl.BlockSpec(memory_space=pltpu.MemorySpace.VMEM),   # P_aug   (d, K_AUG, D_OUT)
        ],
        out_specs=pl.BlockSpec(memory_space=pltpu.MemorySpace.VMEM),
    )(v_flat, x_aug, w0t_aug, pwt_aug)


# ---------------- one-time module setup (static per module) ----------------

def make_sparse_random_matrix(key, weight_dim, intrinsic_dim):
    # sklearn SparseRandomProjection._make_random_matrix(weight_dim, intrinsic_dim):
    #   density = 1/sqrt(n_features); nonzeros = +/- sqrt(1/density)/sqrt(n_components)
    density = 1.0 / (intrinsic_dim ** 0.5)
    scale = (1.0 / density) ** 0.5 / (weight_dim ** 0.5)
    k1, k2 = jax.random.split(key)
    mask = jax.random.uniform(k1, (weight_dim, intrinsic_dim)) < density
    sign = jnp.where(jax.random.bernoulli(k2, 0.5, (weight_dim, intrinsic_dim)), 1.0, -1.0)
    return jnp.where(mask, sign * scale, 0.0).astype(jnp.float32)


def precompute_kernel_constants(w0, b0, p_w, p_b):
    """Done ONCE per module: bias folded into an augmented W^T-oriented layout,
    no lane padding (natural D_OUT=16 width)."""
    # P_w has shape (D_OUT*D_IN, d) with row-major flat index o*D_IN + i.
    # pwt[k, i, o] = P_w[o*D_IN + i, k]  so that  dW^T = sum_k v[k] * pwt[k].
    pwt = p_w.reshape(D_OUT, D_IN, INTRINSIC).transpose(2, 1, 0)         # (d, D_IN, D_OUT)
    w0t_aug = (jnp.zeros((K_AUG, D_OUT), jnp.float32)
               .at[:D_IN, :].set(w0.T)
               .at[D_IN, :].set(b0))                                     # (K_AUG, D_OUT)
    pwt_aug = (jnp.zeros((INTRINSIC, K_AUG, D_OUT), jnp.float32)
               .at[:, :D_IN, :].set(pwt)
               .at[:, D_IN, :].set(p_b.T))                               # (d, K_AUG, D_OUT)
    return w0t_aug, pwt_aug


if __name__ == "__main__":
    key = jax.random.PRNGKey(0)
    k_x, k_w, k_b, k_v, k_pw, k_pb = jax.random.split(key, 6)

    x = jax.random.normal(k_x, (B, D_IN), jnp.float32)

    # wrapped nn.Linear initial params (torch default: U(-1/sqrt(fan_in), 1/sqrt(fan_in)))
    bound = 1.0 / (D_IN ** 0.5)
    w0 = jax.random.uniform(k_w, (D_OUT, D_IN), jnp.float32, -bound, bound)
    b0 = jax.random.uniform(k_b, (D_OUT,), jnp.float32, -bound, bound)

    # intrinsic-dimension parameter V: module inits it to zeros((d,1)); use a small
    # deterministic random V here so the projection path actually contributes.
    v = 0.1 * jax.random.normal(k_v, (INTRINSIC, 1), jnp.float32)

    # one (numel, intrinsic_dim) sparse projection matrix per trainable param
    p_w = make_sparse_random_matrix(k_pw, D_OUT * D_IN, INTRINSIC)       # (512, 24)
    p_b = make_sparse_random_matrix(k_pb, D_OUT, INTRINSIC)              # (16, 24)

    # static, once-per-module precompute (hoisted out of the forward)
    w0t_aug, pwt_aug = precompute_kernel_constants(w0, b0, p_w, p_b)

    y = sparse_wrap_forward(x, v[:, 0], w0t_aug, pwt_aug)
    y = jax.block_until_ready(y)

    # pure-JAX reference for correctness
    ray = jnp.concatenate([p_w, p_b], axis=0) @ v[:, 0]
    params_ref = jnp.concatenate([w0.reshape(-1), b0.reshape(-1)]) + ray
    w_ref = params_ref[:D_OUT * D_IN].reshape(D_OUT, D_IN)
    b_ref = params_ref[D_OUT * D_IN:]
    y_ref = x @ w_ref.T + b_ref[None, :]
    assert jnp.allclose(y, y_ref, atol=1e-5, rtol=1e-5), "mismatch vs reference"

    print("KERNEL_OK")
</pallas_src>

<mosaic_0001>
module attributes {stable_mosaic.version = 11 : i64} {
  func.func @_sparse_wrap_kernel(%arg0: memref<24xf32, #tpu.memory_space<smem>>, %arg1: memref<8x40xf32, #tpu.memory_space<vmem>>, %arg2: memref<40x16xf32, #tpu.memory_space<vmem>>, %arg3: memref<24x40x16xf32, #tpu.memory_space<vmem>>, %arg4: memref<8x16xf32, #tpu.memory_space<vmem>>) attributes {dimension_semantics = [], scalar_prefetch = 0 : i64, scratch_operands = 0 : i64, tpu.core_type = #tpu.core_type<tc>} {
    %c0 = arith.constant 0 : index
    %c0_0 = arith.constant 0 : index
    %0 = vector.load %arg2[%c0, %c0_0] : memref<40x16xf32, #tpu.memory_space<vmem>>, vector<40x16xf32>
    %cst = arith.constant 0.000000e+00 : f32
    %1 = vector.broadcast %cst : f32 to vector<40x16xf32>
    %c0_1 = arith.constant 0 : index
    %2 = memref.load %arg0[%c0_1] : memref<24xf32, #tpu.memory_space<smem>>
    %c0_2 = arith.constant 0 : index
    %c0_3 = arith.constant 0 : index
    %c0_4 = arith.constant 0 : index
    %3 = vector.load %arg3[%c0_2, %c0_3, %c0_4] : memref<24x40x16xf32, #tpu.memory_space<vmem>>, vector<1x40x16xf32>
    %4 = vector.shape_cast %3 : vector<1x40x16xf32> to vector<40x16xf32>
    %5 = vector.broadcast %2 : f32 to vector<40x16xf32>
    %6 = arith.mulf %5, %4 : vector<40x16xf32>
    %7 = arith.addf %0, %6 : vector<40x16xf32>
    %c1 = arith.constant 1 : index
    %8 = memref.load %arg0[%c1] : memref<24xf32, #tpu.memory_space<smem>>
    %c1_5 = arith.constant 1 : index
    %c0_6 = arith.constant 0 : index
    %c0_7 = arith.constant 0 : index
    %9 = vector.load %arg3[%c1_5, %c0_6, %c0_7] : memref<24x40x16xf32, #tpu.memory_space<vmem>>, vector<1x40x16xf32>
    %10 = vector.shape_cast %9 : vector<1x40x16xf32> to vector<40x16xf32>
    %11 = vector.broadcast %8 : f32 to vector<40x16xf32>
    %12 = arith.mulf %11, %10 : vector<40x16xf32>
    %13 = arith.addf %1, %12 : vector<40x16xf32>
    %c2 = arith.constant 2 : index
    %14 = memref.load %arg0[%c2] : memref<24xf32, #tpu.memory_space<smem>>
    %c2_8 = arith.constant 2 : index
    %c0_9 = arith.constant 0 : index
    %c0_10 = arith.constant 0 : index
    %15 = vector.load %arg3[%c2_8, %c0_9, %c0_10] : memref<24x40x16xf32, #tpu.memory_space<vmem>>, vector<1x40x16xf32>
    %16 = vector.shape_cast %15 : vector<1x40x16xf32> to vector<40x16xf32>
    %17 = vector.broadcast %14 : f32 to vector<40x16xf32>
    %18 = arith.mulf %17, %16 : vector<40x16xf32>
    %19 = arith.addf %7, %18 : vector<40x16xf32>
    %c3 = arith.constant 3 : index
    %20 = memref.load %arg0[%c3] : memref<24xf32, #tpu.memory_space<smem>>
    %c3_11 = arith.constant 3 : index
    %c0_12 = arith.constant 0 : index
    %c0_13 = arith.constant 0 : index
    %21 = vector.load %arg3[%c3_11, %c0_12, %c0_13] : memref<24x40x16xf32, #tpu.memory_space<vmem>>, vector<1x40x16xf32>
    %22 = vector.shape_cast %21 : vector<1x40x16xf32> to vector<40x16xf32>
    %23 = vector.broadcast %20 : f32 to vector<40x16xf32>
    %24 = arith.mulf %23, %22 : vector<40x16xf32>
    %25 = arith.addf %13, %24 : vector<40x16xf32>
    %c4 = arith.constant 4 : index
    %26 = memref.load %arg0[%c4] : memref<24xf32, #tpu.memory_space<smem>>
    %c4_14 = arith.constant 4 : index
    %c0_15 = arith.constant 0 : index
    %c0_16 = arith.constant 0 : index
    %27 = vector.load %arg3[%c4_14, %c0_15, %c0_16] : memref<24x40x16xf32, #tpu.memory_space<vmem>>, vector<1x40x16xf32>
    %28 = vector.shape_cast %27 : vector<1x40x16xf32> to vector<40x16xf32>
    %29 = vector.broadcast %26 : f32 to vector<40x16xf32>
    %30 = arith.mulf %29, %28 : vector<40x16xf32>
    %31 = arith.addf %19, %30 : vector<40x16xf32>
    %c5 = arith.constant 5 : index
    %32 = memref.load %arg0[%c5] : memref<24xf32, #tpu.memory_space<smem>>
    %c5_17 = arith.constant 5 : index
    %c0_18 = arith.constant 0 : index
    %c0_19 = arith.constant 0 : index
    %33 = vector.load %arg3[%c5_17, %c0_18, %c0_19] : memref<24x40x16xf32, #tpu.memory_space<vmem>>, vector<1x40x16xf32>
    %34 = vector.shape_cast %33 : vector<1x40x16xf32> to vector<40x16xf32>
    %35 = vector.broadcast %32 : f32 to vector<40x16xf32>
    %36 = arith.mulf %35, %34 : vector<40x16xf32>
    %37 = arith.addf %25, %36 : vector<40x16xf32>
    %c6 = arith.constant 6 : index
    %38 = memref.load %arg0[%c6] : memref<24xf32, #tpu.memory_space<smem>>
    %c6_20 = arith.constant 6 : index
    %c0_21 = arith.constant 0 : index
    %c0_22 = arith.constant 0 : index
    %39 = vector.load %arg3[%c6_20, %c0_21, %c0_22] : memref<24x40x16xf32, #tpu.memory_space<vmem>>, vector<1x40x16xf32>
    %40 = vector.shape_cast %39 : vector<1x40x16xf32> to vector<40x16xf32>
    %41 = vector.broadcast %38 : f32 to vector<40x16xf32>
    %42 = arith.mulf %41, %40 : vector<40x16xf32>
    %43 = arith.addf %31, %42 : vector<40x16xf32>
    %c7 = arith.constant 7 : index
    %44 = memref.load %arg0[%c7] : memref<24xf32, #tpu.memory_space<smem>>
    %c7_23 = arith.constant 7 : index
    %c0_24 = arith.constant 0 : index
    %c0_25 = arith.constant 0 : index
    %45 = vector.load %arg3[%c7_23, %c0_24, %c0_25] : memref<24x40x16xf32, #tpu.memory_space<vmem>>, vector<1x40x16xf32>
    %46 = vector.shape_cast %45 : vector<1x40x16xf32> to vector<40x16xf32>
    %47 = vector.broadcast %44 : f32 to vector<40x16xf32>
    %48 = arith.mulf %47, %46 : vector<40x16xf32>
    %49 = arith.addf %37, %48 : vector<40x16xf32>
    %c8 = arith.constant 8 : index
    %50 = memref.load %arg0[%c8] : memref<24xf32, #tpu.memory_space<smem>>
    %c8_26 = arith.constant 8 : index
    %c0_27 = arith.constant 0 : index
    %c0_28 = arith.constant 0 : index
    %51 = vector.load %arg3[%c8_26, %c0_27, %c0_28] : memref<24x40x16xf32, #tpu.memory_space<vmem>>, vector<1x40x16xf32>
    %52 = vector.shape_cast %51 : vector<1x40x16xf32> to vector<40x16xf32>
    %53 = vector.broadcast %50 : f32 to vector<40x16xf32>
    %54 = arith.mulf %53, %52 : vector<40x16xf32>
    %55 = arith.addf %43, %54 : vector<40x16xf32>
    %c9 = arith.constant 9 : index
    %56 = memref.load %arg0[%c9] : memref<24xf32, #tpu.memory_space<smem>>
    %c9_29 = arith.constant 9 : index
    %c0_30 = arith.constant 0 : index
    %c0_31 = arith.constant 0 : index
    %57 = vector.load %arg3[%c9_29, %c0_30, %c0_31] : memref<24x40x16xf32, #tpu.memory_space<vmem>>, vector<1x40x16xf32>
    %58 = vector.shape_cast %57 : vector<1x40x16xf32> to vector<40x16xf32>
    %59 = vector.broadcast %56 : f32 to vector<40x16xf32>
    %60 = arith.mulf %59, %58 : vector<40x16xf32>
    %61 = arith.addf %49, %60 : vector<40x16xf32>
    %c10 = arith.constant 10 : index
    %62 = memref.load %arg0[%c10] : memref<24xf32, #tpu.memory_space<smem>>
    %c10_32 = arith.constant 10 : index
    %c0_33 = arith.constant 0 : index
    %c0_34 = arith.constant 0 : index
    %63 = vector.load %arg3[%c10_32, %c0_33, %c0_34] : memref<24x40x16xf32, #tpu.memory_space<vmem>>, vector<1x40x16xf32>
    %64 = vector.shape_cast %63 : vector<1x40x16xf32> to vector<40x16xf32>
    %65 = vector.broadcast %62 : f32 to vector<40x16xf32>
    %66 = arith.mulf %65, %64 : vector<40x16xf32>
    %67 = arith.addf %55, %66 : vector<40x16xf32>
    %c11 = arith.constant 11 : index
    %68 = memref.load %arg0[%c11] : memref<24xf32, #tpu.memory_space<smem>>
    %c11_35 = arith.constant 11 : index
    %c0_36 = arith.constant 0 : index
    %c0_37 = arith.constant 0 : index
    %69 = vector.load %arg3[%c11_35, %c0_36, %c0_37] : memref<24x40x16xf32, #tpu.memory_space<vmem>>, vector<1x40x16xf32>
    %70 = vector.shape_cast %69 : vector<1x40x16xf32> to vector<40x16xf32>
    %71 = vector.broadcast %68 : f32 to vector<40x16xf32>
    %72 = arith.mulf %71, %70 : vector<40x16xf32>
    %73 = arith.addf %61, %72 : vector<40x16xf32>
    %c12 = arith.constant 12 : index
    %74 = memref.load %arg0[%c12] : memref<24xf32, #tpu.memory_space<smem>>
    %c12_38 = arith.constant 12 : index
    %c0_39 = arith.constant 0 : index
    %c0_40 = arith.constant 0 : index
    %75 = vector.load %arg3[%c12_38, %c0_39, %c0_40] : memref<24x40x16xf32, #tpu.memory_space<vmem>>, vector<1x40x16xf32>
    %76 = vector.shape_cast %75 : vector<1x40x16xf32> to vector<40x16xf32>
    %77 = vector.broadcast %74 : f32 to vector<40x16xf32>
    %78 = arith.mulf %77, %76 : vector<40x16xf32>
    %79 = arith.addf %67, %78 : vector<40x16xf32>
    %c13 = arith.constant 13 : index
    %80 = memref.load %arg0[%c13] : memref<24xf32, #tpu.memory_space<smem>>
    %c13_41 = arith.constant 13 : index
    %c0_42 = arith.constant 0 : index
    %c0_43 = arith.constant 0 : index
    %81 = vector.load %arg3[%c13_41, %c0_42, %c0_43] : memref<24x40x16xf32, #tpu.memory_space<vmem>>, vector<1x40x16xf32>
    %82 = vector.shape_cast %81 : vector<1x40x16xf32> to vector<40x16xf32>
    %83 = vector.broadcast %80 : f32 to vector<40x16xf32>
    %84 = arith.mulf %83, %82 : vector<40x16xf32>
    %85 = arith.addf %73, %84 : vector<40x16xf32>
    %c14 = arith.constant 14 : index
    %86 = memref.load %arg0[%c14] : memref<24xf32, #tpu.memory_space<smem>>
    %c14_44 = arith.constant 14 : index
    %c0_45 = arith.constant 0 : index
    %c0_46 = arith.constant 0 : index
    %87 = vector.load %arg3[%c14_44, %c0_45, %c0_46] : memref<24x40x16xf32, #tpu.memory_space<vmem>>, vector<1x40x16xf32>
    %88 = vector.shape_cast %87 : vector<1x40x16xf32> to vector<40x16xf32>
    %89 = vector.broadcast %86 : f32 to vector<40x16xf32>
    %90 = arith.mulf %89, %88 : vector<40x16xf32>
    %91 = arith.addf %79, %90 : vector<40x16xf32>
    %c15 = arith.constant 15 : index
    %92 = memref.load %arg0[%c15] : memref<24xf32, #tpu.memory_space<smem>>
    %c15_47 = arith.constant 15 : index
    %c0_48 = arith.constant 0 : index
    %c0_49 = arith.constant 0 : index
    %93 = vector.load %arg3[%c15_47, %c0_48, %c0_49] : memref<24x40x16xf32, #tpu.memory_space<vmem>>, vector<1x40x16xf32>
    %94 = vector.shape_cast %93 : vector<1x40x16xf32> to vector<40x16xf32>
    %95 = vector.broadcast %92 : f32 to vector<40x16xf32>
    %96 = arith.mulf %95, %94 : vector<40x16xf32>
    %97 = arith.addf %85, %96 : vector<40x16xf32>
    %c16 = arith.constant 16 : index
    %98 = memref.load %arg0[%c16] : memref<24xf32, #tpu.memory_space<smem>>
    %c16_50 = arith.constant 16 : index
    %c0_51 = arith.constant 0 : index
    %c0_52 = arith.constant 0 : index
    %99 = vector.load %arg3[%c16_50, %c0_51, %c0_52] : memref<24x40x16xf32, #tpu.memory_space<vmem>>, vector<1x40x16xf32>
    %100 = vector.shape_cast %99 : vector<1x40x16xf32> to vector<40x16xf32>
    %101 = vector.broadcast %98 : f32 to vector<40x16xf32>
    %102 = arith.mulf %101, %100 : vector<40x16xf32>
    %103 = arith.addf %91, %102 : vector<40x16xf32>
    %c17 = arith.constant 17 : index
    %104 = memref.load %arg0[%c17] : memref<24xf32, #tpu.memory_space<smem>>
    %c17_53 = arith.constant 17 : index
    %c0_54 = arith.constant 0 : index
    %c0_55 = arith.constant 0 : index
    %105 = vector.load %arg3[%c17_53, %c0_54, %c0_55] : memref<24x40x16xf32, #tpu.memory_space<vmem>>, vector<1x40x16xf32>
    %106 = vector.shape_cast %105 : vector<1x40x16xf32> to vector<40x16xf32>
    %107 = vector.broadcast %104 : f32 to vector<40x16xf32>
    %108 = arith.mulf %107, %106 : vector<40x16xf32>
    %109 = arith.addf %97, %108 : vector<40x16xf32>
    %c18 = arith.constant 18 : index
    %110 = memref.load %arg0[%c18] : memref<24xf32, #tpu.memory_space<smem>>
    %c18_56 = arith.constant 18 : index
    %c0_57 = arith.constant 0 : index
    %c0_58 = arith.constant 0 : index
    %111 = vector.load %arg3[%c18_56, %c0_57, %c0_58] : memref<24x40x16xf32, #tpu.memory_space<vmem>>, vector<1x40x16xf32>
    %112 = vector.shape_cast %111 : vector<1x40x16xf32> to vector<40x16xf32>
    %113 = vector.broadcast %110 : f32 to vector<40x16xf32>
    %114 = arith.mulf %113, %112 : vector<40x16xf32>
    %115 = arith.addf %103, %114 : vector<40x16xf32>
    %c19 = arith.constant 19 : index
    %116 = memref.load %arg0[%c19] : memref<24xf32, #tpu.memory_space<smem>>
    %c19_59 = arith.constant 19 : index
    %c0_60 = arith.constant 0 : index
    %c0_61 = arith.constant 0 : index
    %117 = vector.load %arg3[%c19_59, %c0_60, %c0_61] : memref<24x40x16xf32, #tpu.memory_space<vmem>>, vector<1x40x16xf32>
    %118 = vector.shape_cast %117 : vector<1x40x16xf32> to vector<40x16xf32>
    %119 = vector.broadcast %116 : f32 to vector<40x16xf32>
    %120 = arith.mulf %119, %118 : vector<40x16xf32>
    %121 = arith.addf %109, %120 : vector<40x16xf32>
    %c20 = arith.constant 20 : index
    %122 = memref.load %arg0[%c20] : memref<24xf32, #tpu.memory_space<smem>>
    %c20_62 = arith.constant 20 : index
    %c0_63 = arith.constant 0 : index
    %c0_64 = arith.constant 0 : index
    %123 = vector.load %arg3[%c20_62, %c0_63, %c0_64] : memref<24x40x16xf32, #tpu.memory_space<vmem>>, vector<1x40x16xf32>
    %124 = vector.shape_cast %123 : vector<1x40x16xf32> to vector<40x16xf32>
    %125 = vector.broadcast %122 : f32 to vector<40x16xf32>
    %126 = arith.mulf %125, %124 : vector<40x16xf32>
    %127 = arith.addf %115, %126 : vector<40x16xf32>
    %c21 = arith.constant 21 : index
    %128 = memref.load %arg0[%c21] : memref<24xf32, #tpu.memory_space<smem>>
    %c21_65 = arith.constant 21 : index
    %c0_66 = arith.constant 0 : index
    %c0_67 = arith.constant 0 : index
    %129 = vector.load %arg3[%c21_65, %c0_66, %c0_67] : memref<24x40x16xf32, #tpu.memory_space<vmem>>, vector<1x40x16xf32>
    %130 = vector.shape_cast %129 : vector<1x40x16xf32> to vector<40x16xf32>
    %131 = vector.broadcast %128 : f32 to vector<40x16xf32>
    %132 = arith.mulf %131, %130 : vector<40x16xf32>
    %133 = arith.addf %121, %132 : vector<40x16xf32>
    %c22 = arith.constant 22 : index
    %134 = memref.load %arg0[%c22] : memref<24xf32, #tpu.memory_space<smem>>
    %c22_68 = arith.constant 22 : index
    %c0_69 = arith.constant 0 : index
    %c0_70 = arith.constant 0 : index
    %135 = vector.load %arg3[%c22_68, %c0_69, %c0_70] : memref<24x40x16xf32, #tpu.memory_space<vmem>>, vector<1x40x16xf32>
    %136 = vector.shape_cast %135 : vector<1x40x16xf32> to vector<40x16xf32>
    %137 = vector.broadcast %134 : f32 to vector<40x16xf32>
    %138 = arith.mulf %137, %136 : vector<40x16xf32>
    %139 = arith.addf %127, %138 : vector<40x16xf32>
    %c23 = arith.constant 23 : index
    %140 = memref.load %arg0[%c23] : memref<24xf32, #tpu.memory_space<smem>>
    %c23_71 = arith.constant 23 : index
    %c0_72 = arith.constant 0 : index
    %c0_73 = arith.constant 0 : index
    %141 = vector.load %arg3[%c23_71, %c0_72, %c0_73] : memref<24x40x16xf32, #tpu.memory_space<vmem>>, vector<1x40x16xf32>
    %142 = vector.shape_cast %141 : vector<1x40x16xf32> to vector<40x16xf32>
    %143 = vector.broadcast %140 : f32 to vector<40x16xf32>
    %144 = arith.mulf %143, %142 : vector<40x16xf32>
    %145 = arith.addf %133, %144 : vector<40x16xf32>
    %146 = arith.addf %139, %145 : vector<40x16xf32>
    %c0_74 = arith.constant 0 : index
    %c0_75 = arith.constant 0 : index
    %147 = vector.load %arg1[%c0_74, %c0_75] : memref<8x40xf32, #tpu.memory_space<vmem>>, vector<8x40xf32>
    %cst_76 = arith.constant dense<0.000000e+00> : vector<8x16xf32>
    %148 = tpu.matmul %147, %146, %cst_76 {dimension_numbers = #tpu.dot_dimension_numbers<[1], [0], [0], [1], [0, 0, 1, 1], [], []>} : vector<8x40xf32>, vector<40x16xf32>, vector<8x16xf32> -> vector<8x16xf32>
    %c0_77 = arith.constant 0 : index
    %c0_78 = arith.constant 0 : index
    %149 = vector.load %arg4[%c0_77, %c0_78] : memref<8x16xf32, #tpu.memory_space<vmem>>, vector<8x16xf32>
    tpu.vector_store %arg4[%c0_77, %c0_78], %148 {strides = array<i32>} : memref<8x16xf32, #tpu.memory_space<vmem>>, vector<8x16xf32>,
    return
  }
}

</mosaic_0001>

<llo_original>
// kernel: sparse_wrap_forward.1
$region0: #{sparse_wrap_forward.1}
  #allocation0 [shape = 'u32[]', space=smem, size = 0x4, offset = 0x4, fixed_abs, tag = 'smem constant byte address 0x4 - core index']
  #allocation1 [shape = 'u32[72,128]{1,0:T(1,128)}', space=vmem, size = 0x9000, scoped, tag = 'internal scratch']
  %s0 = inlined_call_operand.vmem [shape: f32[24], index: 0, kind: input, shape index: {}]
  %s1 = inlined_call_operand.vmem [shape: f32[8,40], index: 1, kind: input, shape index: {}]
  %s2 = inlined_call_operand.vmem [shape: f32[40,16], index: 2, kind: input, shape index: {}]
  %s3 = inlined_call_operand.vmem [shape: f32[24,40,16], index: 3, kind: input, shape index: {}]
  %s4 = inlined_call_operand.hbm [shape: f32[8,16], index: 4, kind: output, shape index: {}]
  %s5 = sld [smem:[#allocation0]]
  $region30: #{sparse_wrap_forward.1} parent=0
    _
  %s7 = ssub.s32 1, %s5
  %s8 = scalar_select 0, %s7, %s5
  $region1: #{sparse_wrap_forward.1} parent=0
    #allocation2 [shape = 'u8[512]{0}', space=smem, size = 0x200, scoped, tag = 'input window, operand 0, single buffered']
    #allocation3 [shape = 's32[1]{0}', space=sflag, size = 0x4, scoped, tag = 'scoped memory for sparse_wrap_forward.1']
    #allocation4 [shape = 's32[1]{0}', space=sflag, size = 0x4, scoped, tag = 'scoped memory for sparse_wrap_forward.1']
    #allocation5 [shape = 'u8[4096]{0}', space=vmem, size = 0x1000, scoped, tag = 'output window, operand 0, single buffered']
    %9 = vsyncpa [#allocation4], 0
    %10 = vsyncpa [#allocation3], 0
    // Predicated region
    $region2: #{sparse_wrap_forward.1} parent=1 // pred_check
      _
    $region3: #{sparse_wrap_forward.1} parent=1 // pred_check_branch
      %12 = sbr.rel (0) target = $region5
    $region4: #{sparse_wrap_forward.1} parent=1 // pred_region
      %14 = vsyncadd [#allocation4], 0
      %s16 = sshll.u32 %s0, 4
      %s17 = int_to_ptr.vmem [resolvable:$true] %s16
      %19 = dma.vmem_to_smem %s17, 16, [#allocation2], [#allocation4]
    $region5: #{sparse_wrap_forward.1} parent=1 // pred_fallthru
      _
    // Predicated region
    $region6: #{sparse_wrap_forward.1} parent=1 // pred_check
      _
    $region7: #{sparse_wrap_forward.1} parent=1 // pred_check_branch
      %21 = sbr.rel (0) target = $region9
    $region8: #{sparse_wrap_forward.1} parent=1 // pred_region
      _
    $region9: #{sparse_wrap_forward.1} parent=1 // pred_fallthru
      _
    // Predicated region
    $region10: #{sparse_wrap_forward.1} parent=1 // pred_check
      _
    $region11: #{sparse_wrap_forward.1} parent=1 // pred_check_branch
      %23 = sbr.rel (0) target = $region13
    $region12: #{sparse_wrap_forward.1} parent=1 // pred_region
      _
    $region13: #{sparse_wrap_forward.1} parent=1 // pred_fallthru
      _
    // Predicated region
    $region14: #{sparse_wrap_forward.1} parent=1 // pred_check
      _
    $region15: #{sparse_wrap_forward.1} parent=1 // pred_check_branch
      %25 = sbr.rel (0) target = $region17
    $region16: #{sparse_wrap_forward.1} parent=1 // pred_region
      _
    $region17: #{sparse_wrap_forward.1} parent=1 // pred_fallthru
      _
    // Predicated region
    $region18: #{sparse_wrap_forward.1} parent=1 // pred_check
      _
    $region19: #{sparse_wrap_forward.1} parent=1 // pred_check_branch
      %27 = sbr.rel (0) target = $region21
    $region20: #{sparse_wrap_forward.1} parent=1 // pred_region
      %29 = dma.done [#allocation4], 16
    $region21: #{sparse_wrap_forward.1} parent=1 // pred_fallthru
      _
    %30 = sfence
    %v31 = vld [vmem:[%s2] sm:$0xff]
    %v32 = vld [vmem:[%s2 + $0x8] sm:$0xff]
    %v33 = vld [vmem:[%s2 + $0x10] sm:$0xff]
    %v34 = vld [vmem:[%s2 + $0x18] sm:$0xff]
    %v35 = vld [vmem:[%s2 + $0x20] sm:$0xff]
    %s36 = sld [smem:[#allocation2]]
    %v37 = vld [vmem:[%s3] sm:$0xff]
    %v38 = vld [vmem:[%s3 + $0x8] sm:$0xff]
    %v39 = vld [vmem:[%s3 + $0x10] sm:$0xff]
    %v40 = vld [vmem:[%s3 + $0x18] sm:$0xff]
    %v41 = vld [vmem:[%s3 + $0x20] sm:$0xff]
    %v42 = vstv %s36
    %v43 = vmul.f32 %v42, %v37
    %v44 = vmul.f32 %v42, %v38
    %v45 = vmul.f32 %v42, %v39
    %v46 = vmul.f32 %v42, %v40
    %v47 = vmul.f32 %v42, %v41
    %v48 = vadd.f32 %v31, %v43
    %v49 = vadd.f32 %v32, %v44
    %v50 = vadd.f32 %v33, %v45
    %v51 = vadd.f32 %v34, %v46
    %v52 = vadd.f32 %v35, %v47
    %s53 = sld [smem:[#allocation2 + $0x1]]
    %s54 = scalar_lea.vmem %s3, 40
    %v55 = vld [vmem:[%s54] sm:$0xff]
    %v56 = vld [vmem:[%s54 + $0x8] sm:$0xff]
    %v57 = vld [vmem:[%s54 + $0x10] sm:$0xff]
    %v58 = vld [vmem:[%s54 + $0x18] sm:$0xff]
    %v59 = vld [vmem:[%s54 + $0x20] sm:$0xff]
    %v60 = vstv %s53
    %v61 = vmul.f32 %v60, %v55
    %v62 = vmul.f32 %v60, %v56
    %v63 = vmul.f32 %v60, %v57
    %v64 = vmul.f32 %v60, %v58
    %v65 = vmul.f32 %v60, %v59
    %v66 = vadd.f32 %v61, 0.0
    %v67 = vadd.f32 %v62, 0.0
    %v68 = vadd.f32 %v63, 0.0
    %v69 = vadd.f32 %v64, 0.0
    %v70 = vadd.f32 %v65, 0.0
    %s71 = sld [smem:[#allocation2 + $0x2]]
    %s72 = scalar_lea.vmem %s3, 80
    %v73 = vld [vmem:[%s72] sm:$0xff]
    %v74 = vld [vmem:[%s72 + $0x8] sm:$0xff]
    %v75 = vld [vmem:[%s72 + $0x10] sm:$0xff]
    %v76 = vld [vmem:[%s72 + $0x18] sm:$0xff]
    %v77 = vld [vmem:[%s72 + $0x20] sm:$0xff]
    %v78 = vstv %s71
    %v79 = vmul.f32 %v78, %v73
    %v80 = vmul.f32 %v78, %v74
    %v81 = vmul.f32 %v78, %v75
    %v82 = vmul.f32 %v78, %v76
    %v83 = vmul.f32 %v78, %v77
    %v84 = vadd.f32 %v48, %v79
    %v85 = vadd.f32 %v49, %v80
    %v86 = vadd.f32 %v50, %v81
    %v87 = vadd.f32 %v51, %v82
    %v88 = vadd.f32 %v52, %v83
    %s89 = sld [smem:[#allocation2 + $0x3]]
    %s90 = scalar_lea.vmem %s3, 120
    %v91 = vld [vmem:[%s90] sm:$0xff]
    %v92 = vld [vmem:[%s90 + $0x8] sm:$0xff]
    %v93 = vld [vmem:[%s90 + $0x10] sm:$0xff]
    %v94 = vld [vmem:[%s90 + $0x18] sm:$0xff]
    %v95 = vld [vmem:[%s90 + $0x20] sm:$0xff]
    %v96 = vstv %s89
    %v97 = vmul.f32 %v96, %v91
    %v98 = vmul.f32 %v96, %v92
    %v99 = vmul.f32 %v96, %v93
    %v100 = vmul.f32 %v96, %v94
    %v101 = vmul.f32 %v96, %v95
    %v102 = vadd.f32 %v66, %v97
    %v103 = vadd.f32 %v67, %v98
    %v104 = vadd.f32 %v68, %v99
    %v105 = vadd.f32 %v69, %v100
    %v106 = vadd.f32 %v70, %v101
    %s107 = sld [smem:[#allocation2 + $0x4]]
    %s108 = scalar_lea.vmem %s3, 160
    %v109 = vld [vmem:[%s108] sm:$0xff]
    %v110 = vld [vmem:[%s108 + $0x8] sm:$0xff]
    %v111 = vld [vmem:[%s108 + $0x10] sm:$0xff]
    %v112 = vld [vmem:[%s108 + $0x18] sm:$0xff]
    %v113 = vld [vmem:[%s108 + $0x20] sm:$0xff]
    %v114 = vstv %s107
    %v115 = vmul.f32 %v114, %v109
    %v116 = vmul.f32 %v114, %v110
    %v117 = vmul.f32 %v114, %v111
    %v118 = vmul.f32 %v114, %v112
    %v119 = vmul.f32 %v114, %v113
    %v120 = vadd.f32 %v84, %v115
    %v121 = vadd.f32 %v85, %v116
    %v122 = vadd.f32 %v86, %v117
    %v123 = vadd.f32 %v87, %v118
    %v124 = vadd.f32 %v88, %v119
    %s125 = sld [smem:[#allocation2 + $0x5]]
    %s126 = scalar_lea.vmem %s3, 200
    %v127 = vld [vmem:[%s126] sm:$0xff]
    %v128 = vld [vmem:[%s126 + $0x8] sm:$0xff]
    %v129 = vld [vmem:[%s126 + $0x10] sm:$0xff]
    %v130 = vld [vmem:[%s126 + $0x18] sm:$0xff]
    %v131 = vld [vmem:[%s126 + $0x20] sm:$0xff]
    %v132 = vstv %s125
    %v133 = vmul.f32 %v132, %v127
    %v134 = vmul.f32 %v132, %v128
    %v135 = vmul.f32 %v132, %v129
    %v136 = vmul.f32 %v132, %v130
    %v137 = vmul.f32 %v132, %v131
    %v138 = vadd.f32 %v102, %v133
    %v139 = vadd.f32 %v103, %v134
    %v140 = vadd.f32 %v104, %v135
    %v141 = vadd.f32 %v105, %v136
    %v142 = vadd.f32 %v106, %v137
    %s143 = sld [smem:[#allocation2 + $0x6]]
    %s144 = scalar_lea.vmem %s3, 240
    %v145 = vld [vmem:[%s144] sm:$0xff]
    %v146 = vld [vmem:[%s144 + $0x8] sm:$0xff]
    %v147 = vld [vmem:[%s144 + $0x10] sm:$0xff]
    %v148 = vld [vmem:[%s144 + $0x18] sm:$0xff]
    %v149 = vld [vmem:[%s144 + $0x20] sm:$0xff]
    %v150 = vstv %s143
    %v151 = vmul.f32 %v150, %v145
    %v152 = vmul.f32 %v150, %v146
    %v153 = vmul.f32 %v150, %v147
    %v154 = vmul.f32 %v150, %v148
    %v155 = vmul.f32 %v150, %v149
    %v156 = vadd.f32 %v120, %v151
    %v157 = vadd.f32 %v121, %v152
    %v158 = vadd.f32 %v122, %v153
    %v159 = vadd.f32 %v123, %v154
    %v160 = vadd.f32 %v124, %v155
    %s161 = sld [smem:[#allocation2 + $0x7]]
    %s162 = scalar_lea.vmem %s3, 280
    %v163 = vld [vmem:[%s162] sm:$0xff]
    %v164 = vld [vmem:[%s162 + $0x8] sm:$0xff]
    %v165 = vld [vmem:[%s162 + $0x10] sm:$0xff]
    %v166 = vld [vmem:[%s162 + $0x18] sm:$0xff]
    %v167 = vld [vmem:[%s162 + $0x20] sm:$0xff]
    %v168 = vstv %s161
    %v169 = vmul.f32 %v168, %v163
    %v170 = vmul.f32 %v168, %v164
    %v171 = vmul.f32 %v168, %v165
    %v172 = vmul.f32 %v168, %v166
    %v173 = vmul.f32 %v168, %v167
    %v174 = vadd.f32 %v138, %v169
    %v175 = vadd.f32 %v139, %v170
    %v176 = vadd.f32 %v140, %v171
    %v177 = vadd.f32 %v141, %v172
    %v178 = vadd.f32 %v142, %v173
    %s179 = sld [smem:[#allocation2 + $0x8]]
    %s180 = scalar_lea.vmem %s3, 320
    %v181 = vld [vmem:[%s180] sm:$0xff]
    %v182 = vld [vmem:[%s180 + $0x8] sm:$0xff]
    %v183 = vld [vmem:[%s180 + $0x10] sm:$0xff]
    %v184 = vld [vmem:[%s180 + $0x18] sm:$0xff]
    %v185 = vld [vmem:[%s180 + $0x20] sm:$0xff]
    %v186 = vstv %s179
    %v187 = vmul.f32 %v186, %v181
    %v188 = vmul.f32 %v186, %v182
    %v189 = vmul.f32 %v186, %v183
    %v190 = vmul.f32 %v186, %v184
    %v191 = vmul.f32 %v186, %v185
    %v192 = vadd.f32 %v156, %v187
    %v193 = vadd.f32 %v157, %v188
    %v194 = vadd.f32 %v158, %v189
    %v195 = vadd.f32 %v159, %v190
    %v196 = vadd.f32 %v160, %v191
    %s197 = sld [smem:[#allocation2 + $0x9]]
    %s198 = scalar_lea.vmem %s3, 360
    %v199 = vld [vmem:[%s198] sm:$0xff]
    %v200 = vld [vmem:[%s198 + $0x8] sm:$0xff]
    %v201 = vld [vmem:[%s198 + $0x10] sm:$0xff]
    %v202 = vld [vmem:[%s198 + $0x18] sm:$0xff]
    %v203 = vld [vmem:[%s198 + $0x20] sm:$0xff]
    %v204 = vstv %s197
    %v205 = vmul.f32 %v204, %v199
    %v206 = vmul.f32 %v204, %v200
    %v207 = vmul.f32 %v204, %v201
    %v208 = vmul.f32 %v204, %v202
    %v209 = vmul.f32 %v204, %v203
    %v210 = vadd.f32 %v174, %v205
    %v211 = vadd.f32 %v175, %v206
    %v212 = vadd.f32 %v176, %v207
    %v213 = vadd.f32 %v177, %v208
    %v214 = vadd.f32 %v178, %v209
    %s215 = sld [smem:[#allocation2 + $0xa]]
    %s216 = scalar_lea.vmem %s3, 400
    %v217 = vld [vmem:[%s216] sm:$0xff]
    %v218 = vld [vmem:[%s216 + $0x8] sm:$0xff]
    %v219 = vld [vmem:[%s216 + $0x10] sm:$0xff]
    %v220 = vld [vmem:[%s216 + $0x18] sm:$0xff]
    %v221 = vld [vmem:[%s216 + $0x20] sm:$0xff]
    %v222 = vstv %s215
    %v223 = vmul.f32 %v222, %v217
    %v224 = vmul.f32 %v222, %v218
    %v225 = vmul.f32 %v222, %v219
    %v226 = vmul.f32 %v222, %v220
    %v227 = vmul.f32 %v222, %v221
    %v228 = vadd.f32 %v192, %v223
    %v229 = vadd.f32 %v193, %v224
    %v230 = vadd.f32 %v194, %v225
    %v231 = vadd.f32 %v195, %v226
    %v232 = vadd.f32 %v196, %v227
    %s233 = sld [smem:[#allocation2 + $0xb]]
    %s234 = scalar_lea.vmem %s3, 440
    %v235 = vld [vmem:[%s234] sm:$0xff]
    %v236 = vld [vmem:[%s234 + $0x8] sm:$0xff]
    %v237 = vld [vmem:[%s234 + $0x10] sm:$0xff]
    %v238 = vld [vmem:[%s234 + $0x18] sm:$0xff]
    %v239 = vld [vmem:[%s234 + $0x20] sm:$0xff]
    %v240 = vstv %s233
    %v241 = vmul.f32 %v240, %v235
    %v242 = vmul.f32 %v240, %v236
    %v243 = vmul.f32 %v240, %v237
    %v244 = vmul.f32 %v240, %v238
    %v245 = vmul.f32 %v240, %v239
    %v246 = vadd.f32 %v210, %v241
    %v247 = vadd.f32 %v211, %v242
    %v248 = vadd.f32 %v212, %v243
    %v249 = vadd.f32 %v213, %v244
    %v250 = vadd.f32 %v214, %v245
    %s251 = sld [smem:[#allocation2 + $0xc]]
    %s252 = scalar_lea.vmem %s3, 480
    %v253 = vld [vmem:[%s252] sm:$0xff]
    %v254 = vld [vmem:[%s252 + $0x8] sm:$0xff]
    %v255 = vld [vmem:[%s252 + $0x10] sm:$0xff]
    %v256 = vld [vmem:[%s252 + $0x18] sm:$0xff]
    %v257 = vld [vmem:[%s252 + $0x20] sm:$0xff]
    %v258 = vstv %s251
    %v259 = vmul.f32 %v258, %v253
    %v260 = vmul.f32 %v258, %v254
    %v261 = vmul.f32 %v258, %v255
    %v262 = vmul.f32 %v258, %v256
    %v263 = vmul.f32 %v258, %v257
    %v264 = vadd.f32 %v228, %v259
    %v265 = vadd.f32 %v229, %v260
    %v266 = vadd.f32 %v230, %v261
    %v267 = vadd.f32 %v231, %v262
    %v268 = vadd.f32 %v232, %v263
    %s269 = sld [smem:[#allocation2 + $0xd]]
    %s270 = scalar_lea.vmem %s3, 520
    %v271 = vld [vmem:[%s270] sm:$0xff]
    %v272 = vld [vmem:[%s270 + $0x8] sm:$0xff]
    %v273 = vld [vmem:[%s270 + $0x10] sm:$0xff]
    %v274 = vld [vmem:[%s270 + $0x18] sm:$0xff]
    %v275 = vld [vmem:[%s270 + $0x20] sm:$0xff]
    %v276 = vstv %s269
    %v277 = vmul.f32 %v276, %v271
    %v278 = vmul.f32 %v276, %v272
    %v279 = vmul.f32 %v276, %v273
    %v280 = vmul.f32 %v276, %v274
    %v281 = vmul.f32 %v276, %v275
    %v282 = vadd.f32 %v246, %v277
    %v283 = vadd.f32 %v247, %v278
    %v284 = vadd.f32 %v248, %v279
    %v285 = vadd.f32 %v249, %v280
    %v286 = vadd.f32 %v250, %v281
    %s287 = sld [smem:[#allocation2 + $0xe]]
    %s288 = scalar_lea.vmem %s3, 560
    %v289 = vld [vmem:[%s288] sm:$0xff]
    %v290 = vld [vmem:[%s288 + $0x8] sm:$0xff]
    %v291 = vld [vmem:[%s288 + $0x10] sm:$0xff]
    %v292 = vld [vmem:[%s288 + $0x18] sm:$0xff]
    %v293 = vld [vmem:[%s288 + $0x20] sm:$0xff]
    %v294 = vstv %s287
    %v295 = vmul.f32 %v294, %v289
    %v296 = vmul.f32 %v294, %v290
    %v297 = vmul.f32 %v294, %v291
    %v298 = vmul.f32 %v294, %v292
    %v299 = vmul.f32 %v294, %v293
    %v300 = vadd.f32 %v264, %v295
    %v301 = vadd.f32 %v265, %v296
    %v302 = vadd.f32 %v266, %v297
    %v303 = vadd.f32 %v267, %v298
    %v304 = vadd.f32 %v268, %v299
    %s305 = sld [smem:[#allocation2 + $0xf]]
    %s306 = scalar_lea.vmem %s3, 600
    %v307 = vld [vmem:[%s306] sm:$0xff]
    %v308 = vld [vmem:[%s306 + $0x8] sm:$0xff]
    %v309 = vld [vmem:[%s306 + $0x10] sm:$0xff]
    %v310 = vld [vmem:[%s306 + $0x18] sm:$0xff]
    %v311 = vld [vmem:[%s306 + $0x20] sm:$0xff]
    %v312 = vstv %s305
    %v313 = vmul.f32 %v312, %v307
    %v314 = vmul.f32 %v312, %v308
    %v315 = vmul.f32 %v312, %v309
    %v316 = vmul.f32 %v312, %v310
    %v317 = vmul.f32 %v312, %v311
    %v318 = vadd.f32 %v282, %v313
    %v319 = vadd.f32 %v283, %v314
    %v320 = vadd.f32 %v284, %v315
    %v321 = vadd.f32 %v285, %v316
    %v322 = vadd.f32 %v286, %v317
    %s323 = sld [smem:[#allocation2 + $0x10]]
    %s324 = scalar_lea.vmem %s3, 640
    %v325 = vld [vmem:[%s324] sm:$0xff]
    %v326 = vld [vmem:[%s324 + $0x8] sm:$0xff]
    %v327 = vld [vmem:[%s324 + $0x10] sm:$0xff]
    %v328 = vld [vmem:[%s324 + $0x18] sm:$0xff]
    %v329 = vld [vmem:[%s324 + $0x20] sm:$0xff]
    %v330 = vstv %s323
    %v331 = vmul.f32 %v330, %v325
    %v332 = vmul.f32 %v330, %v326
    %v333 = vmul.f32 %v330, %v327
    %v334 = vmul.f32 %v330, %v328
    %v335 = vmul.f32 %v330, %v329
    %v336 = vadd.f32 %v300, %v331
    %v337 = vadd.f32 %v301, %v332
    %v338 = vadd.f32 %v302, %v333
    %v339 = vadd.f32 %v303, %v334
    %v340 = vadd.f32 %v304, %v335
    %s341 = sld [smem:[#allocation2 + $0x11]]
    %s342 = scalar_lea.vmem %s3, 680
    %v343 = vld [vmem:[%s342] sm:$0xff]
    %v344 = vld [vmem:[%s342 + $0x8] sm:$0xff]
    %v345 = vld [vmem:[%s342 + $0x10] sm:$0xff]
    %v346 = vld [vmem:[%s342 + $0x18] sm:$0xff]
    %v347 = vld [vmem:[%s342 + $0x20] sm:$0xff]
    %v348 = vstv %s341
    %v349 = vmul.f32 %v348, %v343
    %v350 = vmul.f32 %v348, %v344
    %v351 = vmul.f32 %v348, %v345
    %v352 = vmul.f32 %v348, %v346
    %v353 = vmul.f32 %v348, %v347
    %v354 = vadd.f32 %v318, %v349
    %v355 = vadd.f32 %v319, %v350
    %v356 = vadd.f32 %v320, %v351
    %v357 = vadd.f32 %v321, %v352
    %v358 = vadd.f32 %v322, %v353
    %s359 = sld [smem:[#allocation2 + $0x12]]
    %s360 = scalar_lea.vmem %s3, 720
    %v361 = vld [vmem:[%s360] sm:$0xff]
    %v362 = vld [vmem:[%s360 + $0x8] sm:$0xff]
    %v363 = vld [vmem:[%s360 + $0x10] sm:$0xff]
    %v364 = vld [vmem:[%s360 + $0x18] sm:$0xff]
    %v365 = vld [vmem:[%s360 + $0x20] sm:$0xff]
    %v366 = vstv %s359
    %v367 = vmul.f32 %v366, %v361
    %v368 = vmul.f32 %v366, %v362
    %v369 = vmul.f32 %v366, %v363
    %v370 = vmul.f32 %v366, %v364
    %v371 = vmul.f32 %v366, %v365
    %v372 = vadd.f32 %v336, %v367
    %v373 = vadd.f32 %v337, %v368
    %v374 = vadd.f32 %v338, %v369
    %v375 = vadd.f32 %v339, %v370
    %v376 = vadd.f32 %v340, %v371
    %s377 = sld [smem:[#allocation2 + $0x13]]
    %s378 = scalar_lea.vmem %s3, 760
    %v379 = vld [vmem:[%s378] sm:$0xff]
    %v380 = vld [vmem:[%s378 + $0x8] sm:$0xff]
    %v381 = vld [vmem:[%s378 + $0x10] sm:$0xff]
    %v382 = vld [vmem:[%s378 + $0x18] sm:$0xff]
    %v383 = vld [vmem:[%s378 + $0x20] sm:$0xff]
    %v384 = vstv %s377
    %v385 = vmul.f32 %v384, %v379
    %v386 = vmul.f32 %v384, %v380
    %v387 = vmul.f32 %v384, %v381
    %v388 = vmul.f32 %v384, %v382
    %v389 = vmul.f32 %v384, %v383
    %v390 = vadd.f32 %v354, %v385
    %v391 = vadd.f32 %v355, %v386
    %v392 = vadd.f32 %v356, %v387
    %v393 = vadd.f32 %v357, %v388
    %v394 = vadd.f32 %v358, %v389
    %s395 = sld [smem:[#allocation2 + $0x14]]
    %s396 = scalar_lea.vmem %s3, 800
    %v397 = vld [vmem:[%s396] sm:$0xff]
    %v398 = vld [vmem:[%s396 + $0x8] sm:$0xff]
    %v399 = vld [vmem:[%s396 + $0x10] sm:$0xff]
    %v400 = vld [vmem:[%s396 + $0x18] sm:$0xff]
    %v401 = vld [vmem:[%s396 + $0x20] sm:$0xff]
    %v402 = vstv %s395
    %v403 = vmul.f32 %v402, %v397
    %v404 = vmul.f32 %v402, %v398
    %v405 = vmul.f32 %v402, %v399
    %v406 = vmul.f32 %v402, %v400
    %v407 = vmul.f32 %v402, %v401
    %v408 = vadd.f32 %v372, %v403
    %v409 = vadd.f32 %v373, %v404
    %v410 = vadd.f32 %v374, %v405
    %v411 = vadd.f32 %v375, %v406
    %v412 = vadd.f32 %v376, %v407
    %s413 = sld [smem:[#allocation2 + $0x15]]
    %s414 = scalar_lea.vmem %s3, 840
    %v415 = vld [vmem:[%s414] sm:$0xff]
    %v416 = vld [vmem:[%s414 + $0x8] sm:$0xff]
    %v417 = vld [vmem:[%s414 + $0x10] sm:$0xff]
    %v418 = vld [vmem:[%s414 + $0x18] sm:$0xff]
    %v419 = vld [vmem:[%s414 + $0x20] sm:$0xff]
    %v420 = vstv %s413
    %v421 = vmul.f32 %v420, %v415
    %v422 = vmul.f32 %v420, %v416
    %v423 = vmul.f32 %v420, %v417
    %v424 = vmul.f32 %v420, %v418
    %v425 = vmul.f32 %v420, %v419
    %v426 = vadd.f32 %v390, %v421
    %v427 = vadd.f32 %v391, %v422
    %v428 = vadd.f32 %v392, %v423
    %v429 = vadd.f32 %v393, %v424
    %v430 = vadd.f32 %v394, %v425
    %s431 = sld [smem:[#allocation2 + $0x16]]
    %s432 = scalar_lea.vmem %s3, 880
    %v433 = vld [vmem:[%s432] sm:$0xff]
    %v434 = vld [vmem:[%s432 + $0x8] sm:$0xff]
    %v435 = vld [vmem:[%s432 + $0x10] sm:$0xff]
    %v436 = vld [vmem:[%s432 + $0x18] sm:$0xff]
    %v437 = vld [vmem:[%s432 + $0x20] sm:$0xff]
    %v438 = vstv %s431
    %v439 = vmul.f32 %v438, %v433
    %v440 = vmul.f32 %v438, %v434
    %v441 = vmul.f32 %v438, %v435
    %v442 = vmul.f32 %v438, %v436
    %v443 = vmul.f32 %v438, %v437
    %v444 = vadd.f32 %v408, %v439
    %v445 = vadd.f32 %v409, %v440
    %v446 = vadd.f32 %v410, %v441
    %v447 = vadd.f32 %v411, %v442
    %v448 = vadd.f32 %v412, %v443
    %s449 = sld [smem:[#allocation2 + $0x17]]
    %s450 = scalar_lea.vmem %s3, 920
    %v451 = vld [vmem:[%s450] sm:$0xff]
    %v452 = vld [vmem:[%s450 + $0x8] sm:$0xff]
    %v453 = vld [vmem:[%s450 + $0x10] sm:$0xff]
    %v454 = vld [vmem:[%s450 + $0x18] sm:$0xff]
    %v455 = vld [vmem:[%s450 + $0x20] sm:$0xff]
    %v456 = vstv %s449
    %v457 = vmul.f32 %v456, %v451
    %v458 = vmul.f32 %v456, %v452
    %v459 = vmul.f32 %v456, %v453
    %v460 = vmul.f32 %v456, %v454
    %v461 = vmul.f32 %v456, %v455
    %v462 = vadd.f32 %v426, %v457
    %v463 = vadd.f32 %v427, %v458
    %v464 = vadd.f32 %v428, %v459
    %v465 = vadd.f32 %v429, %v460
    %v466 = vadd.f32 %v430, %v461
    %v467 = vadd.f32 %v444, %v462
    %v468 = vadd.f32 %v445, %v463
    %v469 = vadd.f32 %v446, %v464
    %v470 = vadd.f32 %v447, %v465
    %v471 = vadd.f32 %v448, %v466
    %v472 = vld [vmem:[%s1] sm:$0xff]
    %vm473 = vcmask 326656
    %v475 = vsel %vm473, %v472, 0
    %477 = vmatpush.msra.mxu0 0.0
    %478 = vmatpush.msra.mxu0 0.0
    %479 = vmatpush.msra.mxu0 0.0
    %480 = vmatpush.msra.mxu0 0.0
    %481 = vmatpush.msra.mxu0 0.0
    %482 = vmatpush.msra.mxu0 0.0
    %483 = vmatpush.msra.mxu0 0.0
    %484 = vmatpush.msra.mxu0 0.0
    %485 = vmatpush.msra.mxu0 0.0
    %486 = vmatpush.msra.mxu0 0.0
    %487 = vmatpush.msra.mxu0 0.0
    %488 = vmatpush.msra.mxu0 %v471
    %489 = vmatpush.msra.mxu0 %v470
    %490 = vmatpush.msra.mxu0 %v469
    %491 = vmatpush.msra.mxu0 %v468
    %492 = vmatpush.msra.mxu0 %v467
    %493 = vmatmul.f32.gmra.mxu0 %v475
    %v494 = vpop.f32.mrf.mxu0
    %v495 = vadd.f32 0.0, %v494
    %496 = vdwg.mxu0
    %vm497 = vcmask 130048
    %498 = vst.msk [vmem:[#allocation5] sm:$0xff] %vm497, %v495
    // Predicated region
    $region22: #{sparse_wrap_forward.1} parent=1 // pred_check
      _
    $region23: #{sparse_wrap_forward.1} parent=1 // pred_check_branch
      %500 = sbr.rel (0) target = $region25
    $region24: #{sparse_wrap_forward.1} parent=1 // pred_region
      %502 = vsyncadd [#allocation3], 0
      %s504 = sshll.u32 [#allocation5], 4
      %s505 = int_to_ptr.vmem [resolvable:$true] %s504
      %s506 = sshll.u32 %s4, 4
      %s507 = int_to_ptr.hbm [resolvable:$true] %s506
      %509 = dma.vmem_to_hbm [thread:$0]  %s505, 128, %s507, [#allocation3]
    $region25: #{sparse_wrap_forward.1} parent=1 // pred_fallthru
      _
    // Predicated region
    $region26: #{sparse_wrap_forward.1} parent=1 // pred_check
      _
    $region27: #{sparse_wrap_forward.1} parent=1 // pred_check_branch
      %511 = sbr.rel (0) target = $region29
    $region28: #{sparse_wrap_forward.1} parent=1 // pred_region
      %513 = dma.done [#allocation3], 128
    $region29: #{sparse_wrap_forward.1} parent=1 // pred_fallthru
      _
    %514 = vsyncpa [#allocation3], 1
    %515 = vsyncpa [#allocation4], 1

</llo_original>
